<compile_context>
chip_gen: v6e
topology: v6e:2x2x1
jax: 0.10.0
libtpu: 0.0.40
codegen_flags: <defaults>
</compile_context>

<pallas_src>
import functools

import jax
import jax.numpy as jnp
from jax import lax
from jax.experimental import pallas as pl
from jax.experimental.pallas import tpu as pltpu

BN_EPS = 1e-5
LANE = 128


def _round_up(x, m):
    return ((x + m - 1) // m) * m


# ------------------------------ Pallas kernel -------------------------------

def appnp_net_kernel(feat_ref, w1_ref, b1_ref, w2_ref, b2_ref, w3_ref, b3_ref,
                     a_ref, o_ref, h0_sc, xc_sc, *, K, alpha, tm, a_resident):
    k = pl.program_id(0)                 # 0 = fused MLP pass, 1..K = propagation
    r = pl.program_id(1)                 # node row-tile index
    row0 = pl.multiple_of(r * tm, tm)
    rows = pl.ds(row0, tm)

    @pl.when(k == 0)
    def _mlp():
        # Linear -> ReLU -> (BN folded) Linear -> ReLU -> (BN folded) Linear.
        # bf16 MXU operands, f32 accumulation, f32 bias / ReLU epilogues.
        h = jnp.dot(feat_ref[...], w1_ref[...],
                    preferred_element_type=jnp.float32) + b1_ref[...]
        h = jnp.maximum(h, 0.0)
        h = jnp.dot(h.astype(jnp.bfloat16), w2_ref[...],
                    preferred_element_type=jnp.float32) + b2_ref[...]
        h = jnp.maximum(h, 0.0)
        h0 = jnp.dot(h.astype(jnp.bfloat16), w3_ref[...],
                     preferred_element_type=jnp.float32) + b3_ref[...]
        h0_sc[rows, :] = h0                           # teleport term (f32, resident)
        xc_sc[0, rows, :] = h0.astype(jnp.bfloat16)   # x_0 -> carry buffer 0
        if K == 0:                                    # K == 0: MLP output is final
            o_ref[...] = h0

    if K > 0:
        @pl.when(k > 0)
        def _prop():
            # x_k[rows] = (1 - alpha) * A_hat[rows, :] @ x_{k-1} + alpha * h0[rows]
            a_panel = a_ref[rows, :] if a_resident else a_ref[...]
            src = (k + 1) & 1                         # buffer holding x_{k-1}
            x_prev = xc_sc[src]                       # (Np, fop_p) bf16
            ax = jnp.dot(a_panel, x_prev, preferred_element_type=jnp.float32)
            xk = (1.0 - alpha) * ax + alpha * h0_sc[rows, :]

            @pl.when(k < K)                           # write x_k into the other buffer
            def _carry():
                xk_bf = xk.astype(jnp.bfloat16)

                @pl.when(src == 1)
                def _():
                    xc_sc[0, rows, :] = xk_bf

                @pl.when(src == 0)
                def _():
                    xc_sc[1, rows, :] = xk_bf

            @pl.when(k == K)                          # single HBM writeback pass
            def _out():
                o_ref[...] = xk


# ------------------------------ planning helpers -----------------------------

def _vmem_capacity_bytes():
    try:
        info = pltpu.get_tpu_info()
        cap = getattr(info, "vmem_capacity_bytes", None)
        if cap:
            return int(cap)
    except Exception:
        pass
    return 64 * 1024 * 1024          # conservative: v7x per-TensorCore VMEM


def _plan_tiles(n, fin_p, hp, fop_p, budget_bytes):
    """Pick (row_tile, padded_N, a_resident) under a VMEM byte budget."""
    def fixed_bytes(np_, tm):
        wts = 2 * 2 * (fin_p * hp + hp * hp + hp * fop_p)      # dbl-buffered bf16
        vecs = 2 * 4 * (2 * hp + fop_p)                        # biases (f32)
        scr = np_ * fop_p * 4 + 2 * np_ * fop_p * 2            # h0 f32 + 2x bf16 carry
        io = 2 * tm * fin_p * 2 + 2 * tm * fop_p * 4           # feat bf16 + out f32
        return wts + vecs + scr + io

    cap_tile = max(16, _round_up(n, 16))
    cands = [t for t in (512, 256, 128, 64, 32, 16) if t <= cap_tile] or [16]

    for tm in cands:                                           # A_hat fully resident
        np_ = _round_up(n, tm)
        if fixed_bytes(np_, tm) + 2 * np_ * np_ * 2 <= budget_bytes:
            return tm, np_, True
    for tm in cands:                                           # streamed row panels
        np_ = _round_up(n, tm)
        if fixed_bytes(np_, tm) + 2 * tm * np_ * 2 <= budget_bytes:
            return tm, np_, False
    tm = cands[-1]
    return tm, _round_up(n, tm), False


# ------------------------------ JAX wrapper ----------------------------------

def appnp_net_forward(params, node_feat, a_hat, *, K=10, alpha=0.1):
    N, F_in = node_feat.shape
    H = params["w1"].shape[0]
    F_out = params["w3"].shape[0]

    # ---- fold BatchNorm (eval, running stats) into the following Linear ----
    def fold_bn(bn):
        s = bn["gamma"] * lax.rsqrt(bn["var"] + BN_EPS)
        return s, bn["beta"] - bn["mean"] * s

    s1, t1 = fold_bn(params["bn1"])
    s2, t2 = fold_bn(params["bn2"])

    w1t = params["w1"].astype(jnp.float32).T                        # (F_in, H)
    w2t = params["w2"].astype(jnp.float32).T                        # (H, H)
    w3t = params["w3"].astype(jnp.float32).T                        # (H, F_out)
    b1 = params["b1"].astype(jnp.float32)
    b2 = params["b2"].astype(jnp.float32) + t1 @ w2t
    b3 = params["b3"].astype(jnp.float32) + t2 @ w3t
    w2t = s1[:, None] * w2t
    w3t = s2[:, None] * w3t

    # ---- lane-dense zero padding (exact: padded weights/biases stay zero) ----
    fin_p = _round_up(F_in, LANE)
    hp = _round_up(H, LANE)
    fop_p = _round_up(F_out, LANE)

    def pad2(x, d0, d1):
        return jnp.pad(x, ((0, d0 - x.shape[0]), (0, d1 - x.shape[1])))

    w1 = pad2(w1t, fin_p, hp).astype(jnp.bfloat16)
    w2 = pad2(w2t, hp, hp).astype(jnp.bfloat16)
    w3 = pad2(w3t, hp, fop_p).astype(jnp.bfloat16)
    b1p = pad2(b1.reshape(1, -1), 1, hp)
    b2p = pad2(b2.reshape(1, -1), 1, hp)
    b3p = pad2(b3.reshape(1, -1), 1, fop_p)

    # ---- generation-aware VMEM budget -> tile size / A_hat residency plan ----
    vmem_cap = _vmem_capacity_bytes()
    tm, Np, a_resident = _plan_tiles(N, fin_p, hp, fop_p, int(vmem_cap * 0.70))
    num_r = Np // tm

    feat_p = pad2(node_feat.astype(jnp.float32), Np, fin_p).astype(jnp.bfloat16)
    a_p = pad2(a_hat.astype(jnp.float32), Np, Np).astype(jnp.bfloat16)

    const = lambda k, r: (0, 0)
    feat_map = lambda k, r: (jnp.where(k == 0, r, 0), 0)     # only fetched at k==0
    out_map = lambda k, r: (jnp.where(k == K, r, 0), 0)      # single HBM write pass
    if a_resident:
        a_spec = pl.BlockSpec((Np, Np), const)               # whole A_hat resident
    else:
        a_spec = pl.BlockSpec((tm, Np),
                              lambda k, r: (jnp.where(k == 0, 0, r), 0))

    kern = functools.partial(appnp_net_kernel, K=K, alpha=float(alpha), tm=tm,
                             a_resident=a_resident)

    out_p = pl.pallas_call(
        kern,
        out_shape=jax.ShapeDtypeStruct((Np, fop_p), jnp.float32),
        grid_spec=pltpu.PrefetchScalarGridSpec(
            num_scalar_prefetch=0,
            grid=(K + 1, num_r),
            in_specs=[
                pl.BlockSpec((tm, fin_p), feat_map),   # node features (bf16)
                pl.BlockSpec((fin_p, hp), const),      # W1 (resident)
                pl.BlockSpec((1, hp), const),          # b1
                pl.BlockSpec((hp, hp), const),         # W2 (BN1 folded)
                pl.BlockSpec((1, hp), const),          # b2 (BN1 folded)
                pl.BlockSpec((hp, fop_p), const),      # W3 (BN2 folded)
                pl.BlockSpec((1, fop_p), const),       # b3 (BN2 folded)
                a_spec,                                # A_hat (resident or panel)
            ],
            out_specs=pl.BlockSpec((tm, fop_p), out_map),
            scratch_shapes=[
                pltpu.VMEM((Np, fop_p), jnp.float32),      # h0 teleport term
                pltpu.VMEM((2, Np, fop_p), jnp.bfloat16),  # ping-pong x carry
            ],
        ),
        compiler_params=pltpu.CompilerParams(
            # Both axes carry the sequential x_{k-1} -> x_k dependence via scratch.
            dimension_semantics=("arbitrary", "arbitrary"),
            vmem_limit_bytes=int(vmem_cap * 0.85),
        ),
    )(feat_p, w1, b1p, w2, b2p, w3, b3p, a_p)

    return out_p[:N, :F_out]


# ------------------------------ glue / model ---------------------------------

def gcn_norm_dense(edge_index, num_nodes):
    """Dense gcn_norm: sum duplicate edges, add remaining self-loops, D^-1/2 (A+I) D^-1/2."""
    src, dst = edge_index[0], edge_index[1]
    adj = jnp.zeros((num_nodes, num_nodes), jnp.float32).at[dst, src].add(1.0)
    diag = jnp.diagonal(adj)
    adj = adj + jnp.diag(jnp.where(diag == 0, 1.0, 0.0))   # only nodes w/o self-loop
    deg = adj.sum(axis=1)
    dinv = jnp.where(deg > 0, lax.rsqrt(deg), 0.0)
    return dinv[:, None] * adj * dinv[None, :]


def init_params(key, in_channels, hidden_channels, out_channels):
    ks = jax.random.split(key, 6)

    def lin(kw, kb, fan_in, fan_out):
        bound = 1.0 / jnp.sqrt(fan_in)
        w = jax.random.uniform(kw, (fan_out, fan_in), jnp.float32, -bound, bound)
        b = jax.random.uniform(kb, (fan_out,), jnp.float32, -bound, bound)
        return w, b

    w1, b1 = lin(ks[0], ks[1], in_channels, hidden_channels)
    w2, b2 = lin(ks[2], ks[3], hidden_channels, hidden_channels)
    w3, b3 = lin(ks[4], ks[5], hidden_channels, out_channels)
    bn = lambda h: dict(gamma=jnp.ones((h,), jnp.float32),
                        beta=jnp.zeros((h,), jnp.float32),
                        mean=jnp.zeros((h,), jnp.float32),
                        var=jnp.ones((h,), jnp.float32))
    return dict(w1=w1, b1=b1, bn1=bn(hidden_channels),
                w2=w2, b2=b2, bn2=bn(hidden_channels),
                w3=w3, b3=b3)


def reference_forward(params, node_feat, a_hat, *, K, alpha):
    """Pure-JAX f32 reference (eval-mode semantics of the PyTorch module)."""
    def bn(x, p):
        return (x - p["mean"]) * lax.rsqrt(p["var"] + BN_EPS) * p["gamma"] + p["beta"]
    x = node_feat @ params["w1"].T + params["b1"]
    x = bn(jnp.maximum(x, 0.0), params["bn1"])
    x = x @ params["w2"].T + params["b2"]
    x = bn(jnp.maximum(x, 0.0), params["bn2"])
    x = x @ params["w3"].T + params["b3"]
    h0 = x
    for _ in range(K):
        x = (1.0 - alpha) * (a_hat @ x) + alpha * h0
    return x


if __name__ == "__main__":
    N, F_IN, HIDDEN, F_OUT = 32, 16, 32, 8
    K, ALPHA = 10, 0.1

    key = jax.random.PRNGKey(0)
    k_feat, k_edge, k_param = jax.random.split(key, 3)

    node_feat = jax.random.normal(k_feat, (N, F_IN), jnp.float32)
    edge_index = jax.random.randint(k_edge, (2, 64), 0, N, dtype=jnp.int32)

    a_hat = gcn_norm_dense(edge_index, N)
    params = init_params(k_param, F_IN, HIDDEN, F_OUT)

    fwd = jax.jit(functools.partial(appnp_net_forward, K=K, alpha=ALPHA))
    out = jax.block_until_ready(fwd(params, node_feat, a_hat))

    assert out.shape == (N, F_OUT)
    assert bool(jnp.all(jnp.isfinite(out)))

    ref = reference_forward(params, node_feat, a_hat, K=K, alpha=ALPHA)
    max_err = float(jnp.max(jnp.abs(out - ref)))
    assert max_err < 3e-2, f"mismatch vs f32 reference: {max_err}"

    print("KERNEL_OK")
</pallas_src>

<mosaic_0001>
module attributes {stable_mosaic.version = 11 : i64} {
  func.func @appnp_net_kernel(%arg0: i32, %arg1: i32, %arg2: memref<32x128xbf16, #tpu.memory_space<vmem>>, %arg3: memref<128x128xbf16, #tpu.memory_space<vmem>>, %arg4: memref<1x128xf32, #tpu.memory_space<vmem>>, %arg5: memref<128x128xbf16, #tpu.memory_space<vmem>>, %arg6: memref<1x128xf32, #tpu.memory_space<vmem>>, %arg7: memref<128x128xbf16, #tpu.memory_space<vmem>>, %arg8: memref<1x128xf32, #tpu.memory_space<vmem>>, %arg9: memref<32x32xbf16, #tpu.memory_space<vmem>>, %arg10: memref<32x128xf32, #tpu.memory_space<vmem>>, %arg11: memref<32x128xf32, #tpu.memory_space<vmem>>, %arg12: memref<2x32x128xbf16, #tpu.memory_space<vmem>>) attributes {dimension_semantics = [#tpu.dimension_semantics<arbitrary>, #tpu.dimension_semantics<arbitrary>], iteration_bounds = array<i64: 11, 1>, scalar_prefetch = 0 : i64, scratch_operands = 2 : i64, tpu.core_type = #tpu.core_type<tc>, window_params = [{transform_indices = @transform_0, window_bounds = array<i64: 32, 128>}, {pipeline_mode = #tpu.pipeline_mode<synchronous>, transform_indices = @transform_1, window_bounds = array<i64: 128, 128>}, {pipeline_mode = #tpu.pipeline_mode<synchronous>, transform_indices = @transform_2, window_bounds = array<i64: 1, 128>}, {pipeline_mode = #tpu.pipeline_mode<synchronous>, transform_indices = @transform_3, window_bounds = array<i64: 128, 128>}, {pipeline_mode = #tpu.pipeline_mode<synchronous>, transform_indices = @transform_4, window_bounds = array<i64: 1, 128>}, {pipeline_mode = #tpu.pipeline_mode<synchronous>, transform_indices = @transform_5, window_bounds = array<i64: 128, 128>}, {pipeline_mode = #tpu.pipeline_mode<synchronous>, transform_indices = @transform_6, window_bounds = array<i64: 1, 128>}, {pipeline_mode = #tpu.pipeline_mode<synchronous>, transform_indices = @transform_7, window_bounds = array<i64: 32, 32>}, {transform_indices = @transform_8, window_bounds = array<i64: 32, 128>}]} {
    %c32_i32 = arith.constant 32 : i32
    %0 = arith.muli %arg1, %c32_i32 : i32
    %1 = tpu.assume_multiple %0, 32 : i32
    %c0_i32 = arith.constant 0 : i32
    %2 = arith.cmpi eq, %arg0, %c0_i32 : i32
    %3 = arith.extui %2 : i1 to i32
    %c0_i32_0 = arith.constant 0 : i32
    %4 = arith.cmpi ne, %3, %c0_i32_0 : i32
    scf.if %4 {
      %c0 = arith.constant 0 : index
      %c0_3 = arith.constant 0 : index
      %8 = vector.load %arg2[%c0, %c0_3] : memref<32x128xbf16, #tpu.memory_space<vmem>>, vector<32x128xbf16>
      %c0_4 = arith.constant 0 : index
      %c0_5 = arith.constant 0 : index
      %9 = vector.load %arg3[%c0_4, %c0_5] : memref<128x128xbf16, #tpu.memory_space<vmem>>, vector<128x128xbf16>
      %cst = arith.constant dense<0.000000e+00> : vector<32x128xf32>
      %10 = tpu.matmul %8, %9, %cst {dimension_numbers = #tpu.dot_dimension_numbers<[1], [0], [0], [1], [0, 0, 1, 1], [], []>} : vector<32x128xbf16>, vector<128x128xbf16>, vector<32x128xf32> -> vector<32x128xf32>
      %c0_6 = arith.constant 0 : index
      %c0_7 = arith.constant 0 : index
      %11 = vector.load %arg4[%c0_6, %c0_7] : memref<1x128xf32, #tpu.memory_space<vmem>>, vector<1x128xf32>
      %12 = vector.broadcast %11 : vector<1x128xf32> to vector<32x128xf32>
      %13 = arith.addf %10, %12 : vector<32x128xf32>
      %cst_8 = arith.constant 0.000000e+00 : f32
      %14 = vector.broadcast %cst_8 : f32 to vector<32x128xf32>
      %15 = arith.maximumf %13, %14 : vector<32x128xf32>
      %16 = arith.truncf %15 : vector<32x128xf32> to vector<32x128xbf16>
      %c0_9 = arith.constant 0 : index
      %c0_10 = arith.constant 0 : index
      %17 = vector.load %arg5[%c0_9, %c0_10] : memref<128x128xbf16, #tpu.memory_space<vmem>>, vector<128x128xbf16>
      %cst_11 = arith.constant dense<0.000000e+00> : vector<32x128xf32>
      %18 = tpu.matmul %16, %17, %cst_11 {dimension_numbers = #tpu.dot_dimension_numbers<[1], [0], [0], [1], [0, 0, 1, 1], [], []>} : vector<32x128xbf16>, vector<128x128xbf16>, vector<32x128xf32> -> vector<32x128xf32>
      %c0_12 = arith.constant 0 : index
      %c0_13 = arith.constant 0 : index
      %19 = vector.load %arg6[%c0_12, %c0_13] : memref<1x128xf32, #tpu.memory_space<vmem>>, vector<1x128xf32>
      %20 = vector.broadcast %19 : vector<1x128xf32> to vector<32x128xf32>
      %21 = arith.addf %18, %20 : vector<32x128xf32>
      %cst_14 = arith.constant 0.000000e+00 : f32
      %22 = vector.broadcast %cst_14 : f32 to vector<32x128xf32>
      %23 = arith.maximumf %21, %22 : vector<32x128xf32>
      %24 = arith.truncf %23 : vector<32x128xf32> to vector<32x128xbf16>
      %c0_15 = arith.constant 0 : index
      %c0_16 = arith.constant 0 : index
      %25 = vector.load %arg7[%c0_15, %c0_16] : memref<128x128xbf16, #tpu.memory_space<vmem>>, vector<128x128xbf16>
      %cst_17 = arith.constant dense<0.000000e+00> : vector<32x128xf32>
      %26 = tpu.matmul %24, %25, %cst_17 {dimension_numbers = #tpu.dot_dimension_numbers<[1], [0], [0], [1], [0, 0, 1, 1], [], []>} : vector<32x128xbf16>, vector<128x128xbf16>, vector<32x128xf32> -> vector<32x128xf32>
      %c0_18 = arith.constant 0 : index
      %c0_19 = arith.constant 0 : index
      %27 = vector.load %arg8[%c0_18, %c0_19] : memref<1x128xf32, #tpu.memory_space<vmem>>, vector<1x128xf32>
      %28 = vector.broadcast %27 : vector<1x128xf32> to vector<32x128xf32>
      %29 = arith.addf %26, %28 : vector<32x128xf32>
      %30 = arith.index_cast %1 : i32 to index
      %c0_20 = arith.constant 0 : index
      %31 = vector.load %arg11[%30, %c0_20] : memref<32x128xf32, #tpu.memory_space<vmem>>, vector<32x128xf32>
      tpu.vector_store %arg11[%30, %c0_20], %29 {strides = array<i32>} : memref<32x128xf32, #tpu.memory_space<vmem>>, vector<32x128xf32>,
      %32 = arith.truncf %29 : vector<32x128xf32> to vector<32x128xbf16>
      %c0_21 = arith.constant 0 : index
      %33 = arith.index_cast %1 : i32 to index
      %c0_22 = arith.constant 0 : index
      %34 = vector.load %arg12[%c0_21, %33, %c0_22] : memref<2x32x128xbf16, #tpu.memory_space<vmem>>, vector<1x32x128xbf16>
      %35 = vector.shape_cast %34 : vector<1x32x128xbf16> to vector<32x128xbf16>
      %36 = vector.shape_cast %32 : vector<32x128xbf16> to vector<1x32x128xbf16>
      tpu.vector_store %arg12[%c0_21, %33, %c0_22], %36 {strides = array<i32>} : memref<2x32x128xbf16, #tpu.memory_space<vmem>>, vector<1x32x128xbf16>,
    } else {
    }
    %c0_i32_1 = arith.constant 0 : i32
    %5 = arith.cmpi sgt, %arg0, %c0_i32_1 : i32
    %6 = arith.extui %5 : i1 to i32
    %c0_i32_2 = arith.constant 0 : i32
    %7 = arith.cmpi ne, %6, %c0_i32_2 : i32
    scf.if %7 {
      %8 = arith.index_cast %1 : i32 to index
      %c0 = arith.constant 0 : index
      %9 = vector.load %arg9[%8, %c0] : memref<32x32xbf16, #tpu.memory_space<vmem>>, vector<32x32xbf16>
      %c1_i32 = arith.constant 1 : i32
      %10 = arith.addi %arg0, %c1_i32 : i32
      %c1_i32_3 = arith.constant 1 : i32
      %11 = arith.andi %10, %c1_i32_3 : i32
      %12 = arith.index_cast %11 : i32 to index
      %c0_4 = arith.constant 0 : index
      %c0_5 = arith.constant 0 : index
      %13 = vector.load %arg12[%12, %c0_4, %c0_5] : memref<2x32x128xbf16, #tpu.memory_space<vmem>>, vector<1x32x128xbf16>
      %14 = vector.shape_cast %13 : vector<1x32x128xbf16> to vector<32x128xbf16>
      %cst = arith.constant dense<0.000000e+00> : vector<32x128xf32>
      %15 = tpu.matmul %9, %14, %cst {dimension_numbers = #tpu.dot_dimension_numbers<[1], [0], [0], [1], [0, 0, 1, 1], [], []>} : vector<32x32xbf16>, vector<32x128xbf16>, vector<32x128xf32> -> vector<32x128xf32>
      %cst_6 = arith.constant 0.899999976 : f32
      %16 = vector.broadcast %cst_6 : f32 to vector<32x128xf32>
      %17 = arith.mulf %16, %15 : vector<32x128xf32>
      %18 = arith.index_cast %1 : i32 to index
      %c0_7 = arith.constant 0 : index
      %19 = vector.load %arg11[%18, %c0_7] : memref<32x128xf32, #tpu.memory_space<vmem>>, vector<32x128xf32>
      %cst_8 = arith.constant 1.000000e-01 : f32
      %20 = vector.broadcast %cst_8 : f32 to vector<32x128xf32>
      %21 = arith.mulf %20, %19 : vector<32x128xf32>
      %22 = arith.addf %17, %21 : vector<32x128xf32>
      %c10_i32 = arith.constant 10 : i32
      %23 = arith.cmpi slt, %arg0, %c10_i32 : i32
      %24 = arith.extui %23 : i1 to i32
      %c0_i32_9 = arith.constant 0 : i32
      %25 = arith.cmpi ne, %24, %c0_i32_9 : i32
      scf.if %25 {
        %29 = arith.truncf %22 : vector<32x128xf32> to vector<32x128xbf16>
        %c1_i32_12 = arith.constant 1 : i32
        %30 = arith.cmpi eq, %11, %c1_i32_12 : i32
        %31 = arith.extui %30 : i1 to i32
        %c0_i32_13 = arith.constant 0 : i32
        %32 = arith.cmpi ne, %31, %c0_i32_13 : i32
        scf.if %32 {
          %c0_16 = arith.constant 0 : index
          %36 = arith.index_cast %1 : i32 to index
          %c0_17 = arith.constant 0 : index
          %37 = vector.load %arg12[%c0_16, %36, %c0_17] : memref<2x32x128xbf16, #tpu.memory_space<vmem>>, vector<1x32x128xbf16>
          %38 = vector.shape_cast %37 : vector<1x32x128xbf16> to vector<32x128xbf16>
          %39 = vector.shape_cast %29 : vector<32x128xbf16> to vector<1x32x128xbf16>
          tpu.vector_store %arg12[%c0_16, %36, %c0_17], %39 {strides = array<i32>} : memref<2x32x128xbf16, #tpu.memory_space<vmem>>, vector<1x32x128xbf16>,
        } else {
        }
        %c0_i32_14 = arith.constant 0 : i32
        %33 = arith.cmpi eq, %11, %c0_i32_14 : i32
        %34 = arith.extui %33 : i1 to i32
        %c0_i32_15 = arith.constant 0 : i32
        %35 = arith.cmpi ne, %34, %c0_i32_15 : i32
        scf.if %35 {
          %c1 = arith.constant 1 : index
          %36 = arith.index_cast %1 : i32 to index
          %c0_16 = arith.constant 0 : index
          %37 = vector.load %arg12[%c1, %36, %c0_16] : memref<2x32x128xbf16, #tpu.memory_space<vmem>>, vector<1x32x128xbf16>
          %38 = vector.shape_cast %37 : vector<1x32x128xbf16> to vector<32x128xbf16>
          %39 = vector.shape_cast %29 : vector<32x128xbf16> to vector<1x32x128xbf16>
          tpu.vector_store %arg12[%c1, %36, %c0_16], %39 {strides = array<i32>} : memref<2x32x128xbf16, #tpu.memory_space<vmem>>, vector<1x32x128xbf16>,
        } else {
        }
      } else {
      }
      %c10_i32_10 = arith.constant 10 : i32
      %26 = arith.cmpi eq, %arg0, %c10_i32_10 : i32
      %27 = arith.extui %26 : i1 to i32
      %c0_i32_11 = arith.constant 0 : i32
      %28 = arith.cmpi ne, %27, %c0_i32_11 : i32
      scf.if %28 {
        %c0_12 = arith.constant 0 : index
        %c0_13 = arith.constant 0 : index
        %29 = vector.load %arg10[%c0_12, %c0_13] : memref<32x128xf32, #tpu.memory_space<vmem>>, vector<32x128xf32>
        tpu.vector_store %arg10[%c0_12, %c0_13], %22 {strides = array<i32>} : memref<32x128xf32, #tpu.memory_space<vmem>>, vector<32x128xf32>,
      } else {
      }
    } else {
    }
    return
  }
  func.func @transform_0(%arg0: i32, %arg1: i32) -> (i32, i32) {
    %c0_i32 = arith.constant 0 : i32
    %0 = arith.cmpi eq, %arg0, %c0_i32 : i32
    %c0_i32_0 = arith.constant 0 : i32
    %1 = arith.select %0, %arg1, %c0_i32_0 : i32
    %c0_i32_1 = arith.constant 0 : i32
    %c0_i32_2 = arith.constant 0 : i32
    return %1, %c0_i32_1 : i32, i32
  }
  func.func @transform_1(%arg0: i32, %arg1: i32) -> (i32, i32) {
    %c0_i32 = arith.constant 0 : i32
    %c0_i32_0 = arith.constant 0 : i32
    %c0_i32_1 = arith.constant 0 : i32
    return %c0_i32, %c0_i32_0 : i32, i32
  }
  func.func @transform_2(%arg0: i32, %arg1: i32) -> (i32, i32) {
    %c0_i32 = arith.constant 0 : i32
    %c0_i32_0 = arith.constant 0 : i32
    %c0_i32_1 = arith.constant 0 : i32
    return %c0_i32, %c0_i32_0 : i32, i32
  }
  func.func @transform_3(%arg0: i32, %arg1: i32) -> (i32, i32) {
    %c0_i32 = arith.constant 0 : i32
    %c0_i32_0 = arith.constant 0 : i32
    %c0_i32_1 = arith.constant 0 : i32
    return %c0_i32, %c0_i32_0 : i32, i32
  }
  func.func @transform_4(%arg0: i32, %arg1: i32) -> (i32, i32) {
    %c0_i32 = arith.constant 0 : i32
    %c0_i32_0 = arith.constant 0 : i32
    %c0_i32_1 = arith.constant 0 : i32
    return %c0_i32, %c0_i32_0 : i32, i32
  }
  func.func @transform_5(%arg0: i32, %arg1: i32) -> (i32, i32) {
    %c0_i32 = arith.constant 0 : i32
    %c0_i32_0 = arith.constant 0 : i32
    %c0_i32_1 = arith.constant 0 : i32
    return %c0_i32, %c0_i32_0 : i32, i32
  }
  func.func @transform_6(%arg0: i32, %arg1: i32) -> (i32, i32) {
    %c0_i32 = arith.constant 0 : i32
    %c0_i32_0 = arith.constant 0 : i32
    %c0_i32_1 = arith.constant 0 : i32
    return %c0_i32, %c0_i32_0 : i32, i32
  }
  func.func @transform_7(%arg0: i32, %arg1: i32) -> (i32, i32) {
    %c0_i32 = arith.constant 0 : i32
    %c0_i32_0 = arith.constant 0 : i32
    %c0_i32_1 = arith.constant 0 : i32
    return %c0_i32, %c0_i32_0 : i32, i32
  }
  func.func @transform_8(%arg0: i32, %arg1: i32) -> (i32, i32) {
    %c10_i32 = arith.constant 10 : i32
    %0 = arith.cmpi eq, %arg0, %c10_i32 : i32
    %c0_i32 = arith.constant 0 : i32
    %1 = arith.select %0, %arg1, %c0_i32 : i32
    %c0_i32_0 = arith.constant 0 : i32
    %c0_i32_1 = arith.constant 0 : i32
    return %1, %c0_i32_0 : i32, i32
  }
}

</mosaic_0001>

<llo_original>
// kernel: appnp_net_forward.1
$region0: #{appnp_net_forward.1}
  #allocation0 [shape = 'u32[]', space=smem, size = 0x4, offset = 0x4, fixed_abs, tag = 'smem constant byte address 0x4 - core index']
  #allocation1 [shape = 'u32[144,128]{1,0:T(1,128)}', space=vmem, size = 0x12000, scoped, tag = 'internal scratch']
  #allocation2 [shape = 'f32[32,128]{1,0:T(8,128)}', space=vmem, size = 0x4000, scoped, tag = 'scratch operand']
  #allocation3 [shape = 'bf16[2,32,128]{2,1,0:T(8,128)(2,1)}', space=vmem, size = 0x4000, scoped, tag = 'scratch operand']
  %s0 = inlined_call_operand.vmem [shape: bf16[32,128], index: 0, kind: input, shape index: {}]
  %s1 = inlined_call_operand.vmem [shape: bf16[128,128], index: 1, kind: input, shape index: {}]
  %s2 = inlined_call_operand.vmem [shape: f32[1,128], index: 2, kind: input, shape index: {}]
  %s3 = inlined_call_operand.vmem [shape: bf16[128,128], index: 3, kind: input, shape index: {}]
  %s4 = inlined_call_operand.vmem [shape: f32[1,128], index: 4, kind: input, shape index: {}]
  %s5 = inlined_call_operand.vmem [shape: bf16[128,128], index: 5, kind: input, shape index: {}]
  %s6 = inlined_call_operand.vmem [shape: f32[1,128], index: 6, kind: input, shape index: {}]
  %s7 = inlined_call_operand.vmem [shape: bf16[32,32], index: 7, kind: input, shape index: {}]
  %s8 = inlined_call_operand.vmem [shape: f32[32,128], index: 8, kind: output, shape index: {}]
  %s9 = sld [smem:[#allocation0]]
  $region89: #{appnp_net_forward.1} parent=0
    _
  %s11 = ssub.s32 1, %s9
  %s12 = scalar_select 0, %s11, %s9
  loop: start=0, step=1, limit=13
  $region2: #{appnp_net_forward.1} parent=0 // loop_pre_header
    _
  $region3: #{appnp_net_forward.1} parent=0 // loop_header
    %s14 = sphi 0, %s18
    %p15 = scmp.ge.s32.totalorder %s14, 13
    %s21 = sphi 0, %s33
    %s22 = sphi 0, %s29
    %s23 = sphi 0, %s21
    %s24 = sphi 0, %s22
    %s25 = sphi 0, %s23
    %s26 = sphi 0, %s24
    %s40 = sphi 0, %s42
    %s43 = sphi 0, %s40
    %s44 = sphi 0, %s43
    %s60 = sphi 0, %s44
    %s64 = sphi 0, %s64
    %s66 = sphi 0, %s64
    %s67 = sphi 0, %s66
    %s81 = sphi 0, %s67
    %s85 = sphi 0, %s85
    %s87 = sphi 0, %s85
    %s88 = sphi 0, %s87
    %s102 = sphi 0, %s88
    %s106 = sphi 0, %s106
    %s108 = sphi 0, %s106
    %s109 = sphi 0, %s108
    %s123 = sphi 0, %s109
    %s127 = sphi 0, %s127
    %s129 = sphi 0, %s127
    %s130 = sphi 0, %s129
    %s144 = sphi 0, %s130
    %s148 = sphi 0, %s148
    %s150 = sphi 0, %s148
    %s151 = sphi 0, %s150
    %s165 = sphi 0, %s151
    %s169 = sphi 0, %s169
    %s171 = sphi 0, %s169
    %s172 = sphi 0, %s171
    %s186 = sphi 0, %s172
    %s190 = sphi 0, %s190
    %s192 = sphi 0, %s190
    %s193 = sphi 0, %s192
    %s207 = sphi 0, %s193
    %s217 = sphi 0, %s219
    %s220 = sphi 0, %s217
    %s221 = sphi 0, %s220
    %s237 = sphi 0, %s221
  $region4: #{appnp_net_forward.1} parent=0 // loop_header_branch
    %17 = sbr.rel (%p15) target = $region8
  $region5: #{appnp_net_forward.1} parent=0 // loop_body
    %s19 = ssub.s32 %s14, 1
    %s20 = ssub.s32 %s14, 2
    %s27 = sadd.s32 1, %s22
    %p28 = scmp.ge.s32.totalorder %s27, 1
    %s29 = scalar_select %p28, 0, %s27
    %s30 = sadd.s32 1, %s21
    %s31 = scalar_select %p28, %s30, %s21
    %p32 = scmp.ge.s32.totalorder %s31, 11
    %s33 = scalar_select %p32, 0, %s31
    %p34 = scmp.eq.s32.totalorder %s21, 0
    %s35 = scalar_select %p34, %s22, 0
    %p36 = scmp.eq.s32.totalorder %s33, 0
    %s37 = scalar_select %p36, %s29, 0
    %s38 = ssub.s32 %s35, %s37
    %p39 = scmp.eq.s32.totalorder %s38, 0
    %s41 = sadd.s32 %s40, 1
    %s42 = scalar_select %p39, %s40, %s41
    %p45 = pneg %p39
    %p46 = scmp.eq.s32.totalorder %s14, 10
    %p47 = por %p45, %p46
    %p48 = scmp.ne.s32.totalorder %s40, %s43
    %p49 = scmp.eq.s32.totalorder %s14, 0
    %p50 = por %p48, %p49
    %p51 = scmp.ne.s32.totalorder %s40, %s43
    %p52 = scmp.eq.s32.totalorder %s19, 10
    %p53 = por %p51, %p52
    %p54 = scmp.ne.s32.totalorder %s43, %s44
    %p55 = scmp.eq.s32.totalorder %s19, 0
    %p56 = por %p54, %p55
    %p57 = scmp.ne.s32.totalorder %s43, %s44
    %p58 = scmp.eq.s32.totalorder %s20, 10
    %p59 = por %p57, %p58
    %p61 = scmp.ne.s32.totalorder %s44, %s60
    %p62 = scmp.eq.s32.totalorder %s20, 0
    %p63 = por %p61, %p62
    %s65 = sadd.s32 %s64, 1
    %p68 = scmp.eq.s32.totalorder %s14, 10
    %p69 = scmp.ne.s32.totalorder %s64, %s66
    %p70 = scmp.eq.s32.totalorder %s14, 0
    %p71 = por %p69, %p70
    %p72 = scmp.ne.s32.totalorder %s64, %s66
    %p73 = scmp.eq.s32.totalorder %s19, 10
    %p74 = por %p72, %p73
    %p75 = scmp.ne.s32.totalorder %s66, %s67
    %p76 = scmp.eq.s32.totalorder %s19, 0
    %p77 = por %p75, %p76
    %p78 = scmp.ne.s32.totalorder %s66, %s67
    %p79 = scmp.eq.s32.totalorder %s20, 10
    %p80 = por %p78, %p79
    %p82 = scmp.ne.s32.totalorder %s67, %s81
    %p83 = scmp.eq.s32.totalorder %s20, 0
    %p84 = por %p82, %p83
    %s86 = sadd.s32 %s85, 1
    %p89 = scmp.eq.s32.totalorder %s14, 10
    %p90 = scmp.ne.s32.totalorder %s85, %s87
    %p91 = scmp.eq.s32.totalorder %s14, 0
    %p92 = por %p90, %p91
    %p93 = scmp.ne.s32.totalorder %s85, %s87
    %p94 = scmp.eq.s32.totalorder %s19, 10
    %p95 = por %p93, %p94
    %p96 = scmp.ne.s32.totalorder %s87, %s88
    %p97 = scmp.eq.s32.totalorder %s19, 0
    %p98 = por %p96, %p97
    %p99 = scmp.ne.s32.totalorder %s87, %s88
    %p100 = scmp.eq.s32.totalorder %s20, 10
    %p101 = por %p99, %p100
    %p103 = scmp.ne.s32.totalorder %s88, %s102
    %p104 = scmp.eq.s32.totalorder %s20, 0
    %p105 = por %p103, %p104
    %s107 = sadd.s32 %s106, 1
    %p110 = scmp.eq.s32.totalorder %s14, 10
    %p111 = scmp.ne.s32.totalorder %s106, %s108
    %p112 = scmp.eq.s32.totalorder %s14, 0
    %p113 = por %p111, %p112
    %p114 = scmp.ne.s32.totalorder %s106, %s108
    %p115 = scmp.eq.s32.totalorder %s19, 10
    %p116 = por %p114, %p115
    %p117 = scmp.ne.s32.totalorder %s108, %s109
    %p118 = scmp.eq.s32.totalorder %s19, 0
    %p119 = por %p117, %p118
    %p120 = scmp.ne.s32.totalorder %s108, %s109
    %p121 = scmp.eq.s32.totalorder %s20, 10
    %p122 = por %p120, %p121
    %p124 = scmp.ne.s32.totalorder %s109, %s123
    %p125 = scmp.eq.s32.totalorder %s20, 0
    %p126 = por %p124, %p125
    %s128 = sadd.s32 %s127, 1
    %p131 = scmp.eq.s32.totalorder %s14, 10
    %p132 = scmp.ne.s32.totalorder %s127, %s129
    %p133 = scmp.eq.s32.totalorder %s14, 0
    %p134 = por %p132, %p133
    %p135 = scmp.ne.s32.totalorder %s127, %s129
    %p136 = scmp.eq.s32.totalorder %s19, 10
    %p137 = por %p135, %p136
    %p138 = scmp.ne.s32.totalorder %s129, %s130
    %p139 = scmp.eq.s32.totalorder %s19, 0
    %p140 = por %p138, %p139
    %p141 = scmp.ne.s32.totalorder %s129, %s130
    %p142 = scmp.eq.s32.totalorder %s20, 10
    %p143 = por %p141, %p142
    %p145 = scmp.ne.s32.totalorder %s130, %s144
    %p146 = scmp.eq.s32.totalorder %s20, 0
    %p147 = por %p145, %p146
    %s149 = sadd.s32 %s148, 1
    %p152 = scmp.eq.s32.totalorder %s14, 10
    %p153 = scmp.ne.s32.totalorder %s148, %s150
    %p154 = scmp.eq.s32.totalorder %s14, 0
    %p155 = por %p153, %p154
    %p156 = scmp.ne.s32.totalorder %s148, %s150
    %p157 = scmp.eq.s32.totalorder %s19, 10
    %p158 = por %p156, %p157
    %p159 = scmp.ne.s32.totalorder %s150, %s151
    %p160 = scmp.eq.s32.totalorder %s19, 0
    %p161 = por %p159, %p160
    %p162 = scmp.ne.s32.totalorder %s150, %s151
    %p163 = scmp.eq.s32.totalorder %s20, 10
    %p164 = por %p162, %p163
    %p166 = scmp.ne.s32.totalorder %s151, %s165
    %p167 = scmp.eq.s32.totalorder %s20, 0
    %p168 = por %p166, %p167
    %s170 = sadd.s32 %s169, 1
    %p173 = scmp.eq.s32.totalorder %s14, 10
    %p174 = scmp.ne.s32.totalorder %s169, %s171
    %p175 = scmp.eq.s32.totalorder %s14, 0
    %p176 = por %p174, %p175
    %p177 = scmp.ne.s32.totalorder %s169, %s171
    %p178 = scmp.eq.s32.totalorder %s19, 10
    %p179 = por %p177, %p178
    %p180 = scmp.ne.s32.totalorder %s171, %s172
    %p181 = scmp.eq.s32.totalorder %s19, 0
    %p182 = por %p180, %p181
    %p183 = scmp.ne.s32.totalorder %s171, %s172
    %p184 = scmp.eq.s32.totalorder %s20, 10
    %p185 = por %p183, %p184
    %p187 = scmp.ne.s32.totalorder %s172, %s186
    %p188 = scmp.eq.s32.totalorder %s20, 0
    %p189 = por %p187, %p188
    %s191 = sadd.s32 %s190, 1
    %p194 = scmp.eq.s32.totalorder %s14, 10
    %p195 = scmp.ne.s32.totalorder %s190, %s192
    %p196 = scmp.eq.s32.totalorder %s14, 0
    %p197 = por %p195, %p196
    %p198 = scmp.ne.s32.totalorder %s190, %s192
    %p199 = scmp.eq.s32.totalorder %s19, 10
    %p200 = por %p198, %p199
    %p201 = scmp.ne.s32.totalorder %s192, %s193
    %p202 = scmp.eq.s32.totalorder %s19, 0
    %p203 = por %p201, %p202
    %p204 = scmp.ne.s32.totalorder %s192, %s193
    %p205 = scmp.eq.s32.totalorder %s20, 10
    %p206 = por %p204, %p205
    %p208 = scmp.ne.s32.totalorder %s193, %s207
    %p209 = scmp.eq.s32.totalorder %s20, 0
    %p210 = por %p208, %p209
    %p211 = scmp.eq.s32.totalorder %s21, 10
    %s212 = scalar_select %p211, %s22, 0
    %p213 = scmp.eq.s32.totalorder %s33, 10
    %s214 = scalar_select %p213, %s29, 0
    %s215 = ssub.s32 %s212, %s214
    %p216 = scmp.eq.s32.totalorder %s215, 0
    %s218 = sadd.s32 %s217, 1
    %s219 = scalar_select %p216, %s217, %s218
    %p222 = pneg %p216
    %p223 = scmp.eq.s32.totalorder %s14, 10
    %p224 = por %p222, %p223
    %p225 = scmp.ne.s32.totalorder %s217, %s220
    %p226 = scmp.eq.s32.totalorder %s14, 0
    %p227 = por %p225, %p226
    %p228 = scmp.ne.s32.totalorder %s217, %s220
    %p229 = scmp.eq.s32.totalorder %s19, 10
    %p230 = por %p228, %p229
    %p231 = scmp.ne.s32.totalorder %s220, %s221
    %p232 = scmp.eq.s32.totalorder %s19, 0
    %p233 = por %p231, %p232
    %p234 = scmp.ne.s32.totalorder %s220, %s221
    %p235 = scmp.eq.s32.totalorder %s20, 10
    %p236 = por %p234, %p235
    %p238 = scmp.ne.s32.totalorder %s221, %s237
    %p239 = scmp.eq.s32.totalorder %s20, 0
    %p240 = por %p238, %p239
    %p241 = scmp.le.s32.totalorder 1, %s14
    %p242 = scmp.lt.s32.totalorder %s14, 12
    %p243 = pnand %p241, %p242
    %p244 = pneg %p243
    // Predicated region
    $region9: #{appnp_net_forward.1} parent=5 // pred_check
      _
    $region10: #{appnp_net_forward.1} parent=5 // pred_check_branch
      %246 = sbr.rel (%p243) target = $region12
    $region11: #{appnp_net_forward.1} parent=5 // pred_region
      %s247 = ssub.s32 %s14, 1
      // Predicated region
      $region13: #{appnp_net_forward.1} parent=11 // pred_check
        %p248 = pneg %p77
      $region14: #{appnp_net_forward.1} parent=11 // pred_check_branch
        %250 = sbr.rel (%p248) target = $region16
      $region15: #{appnp_net_forward.1} parent=11 // pred_region
        _
      $region16: #{appnp_net_forward.1} parent=11 // pred_fallthru
        _
      // Predicated region
      $region17: #{appnp_net_forward.1} parent=11 // pred_check
        %p251 = pneg %p98
      $region18: #{appnp_net_forward.1} parent=11 // pred_check_branch
        %253 = sbr.rel (%p251) target = $region20
      $region19: #{appnp_net_forward.1} parent=11 // pred_region
        _
      $region20: #{appnp_net_forward.1} parent=11 // pred_fallthru
        _
      // Predicated region
      $region21: #{appnp_net_forward.1} parent=11 // pred_check
        %p254 = pneg %p119
      $region22: #{appnp_net_forward.1} parent=11 // pred_check_branch
        %256 = sbr.rel (%p254) target = $region24
      $region23: #{appnp_net_forward.1} parent=11 // pred_region
        _
      $region24: #{appnp_net_forward.1} parent=11 // pred_fallthru
        _
      // Predicated region
      $region25: #{appnp_net_forward.1} parent=11 // pred_check
        %p257 = pneg %p140
      $region26: #{appnp_net_forward.1} parent=11 // pred_check_branch
        %259 = sbr.rel (%p257) target = $region28
      $region27: #{appnp_net_forward.1} parent=11 // pred_region
        _
      $region28: #{appnp_net_forward.1} parent=11 // pred_fallthru
        _
      // Predicated region
      $region29: #{appnp_net_forward.1} parent=11 // pred_check
        %p260 = pneg %p161
      $region30: #{appnp_net_forward.1} parent=11 // pred_check_branch
        %262 = sbr.rel (%p260) target = $region32
      $region31: #{appnp_net_forward.1} parent=11 // pred_region
        _
      $region32: #{appnp_net_forward.1} parent=11 // pred_fallthru
        _
      // Predicated region
      $region33: #{appnp_net_forward.1} parent=11 // pred_check
        %p263 = pneg %p182
      $region34: #{appnp_net_forward.1} parent=11 // pred_check_branch
        %265 = sbr.rel (%p263) target = $region36
      $region35: #{appnp_net_forward.1} parent=11 // pred_region
        _
      $region36: #{appnp_net_forward.1} parent=11 // pred_fallthru
        _
      // Predicated region
      $region37: #{appnp_net_forward.1} parent=11 // pred_check
        %p266 = pneg %p203
      $region38: #{appnp_net_forward.1} parent=11 // pred_check_branch
        %268 = sbr.rel (%p266) target = $region40
      $region39: #{appnp_net_forward.1} parent=11 // pred_region
        _
      $region40: #{appnp_net_forward.1} parent=11 // pred_fallthru
        _
    $region12: #{appnp_net_forward.1} parent=5 // pred_fallthru
      _
    %p269 = scmp.lt.s32.totalorder %s14, 11
    // Predicated region
    $region41: #{appnp_net_forward.1} parent=5 // pred_check
      %p270 = pneg %p269
    $region42: #{appnp_net_forward.1} parent=5 // pred_check_branch
      %272 = sbr.rel (%p270) target = $region44
    $region43: #{appnp_net_forward.1} parent=5 // pred_region
      // Predicated region
      $region45: #{appnp_net_forward.1} parent=43 // pred_check
        %p273 = pneg %p50
      $region46: #{appnp_net_forward.1} parent=43 // pred_check_branch
        %275 = sbr.rel (%p273) target = $region48
      $region47: #{appnp_net_forward.1} parent=43 // pred_region
        %p276 = scmp.eq.s32.totalorder %s21, 0
        %s277 = scalar_select %p276, %s22, 0
        %s278 = smul.u32 4, %s277
        %p279 = scmp.lt.s32.totalorder %s278, 3
        %s280 = scalar_select %p279, %s278, 3
        %s281 = smul.addr %s280, 4
        %s282 = scalar_lea.vmem %s0, %s281
        %p283 = scmp.eq.s32.totalorder %s21, 0
        %s284 = scalar_select %p283, %s22, 0
        %s285 = smul.u32 4, %s284
      $region48: #{appnp_net_forward.1} parent=43 // pred_fallthru
        _
    $region44: #{appnp_net_forward.1} parent=5 // pred_fallthru
      _
    %p286 = scmp.le.s32.totalorder 1, %s14
    %p287 = scmp.lt.s32.totalorder %s14, 12
    %p288 = pnand %p286, %p287
    %p289 = pneg %p288
    // Predicated region
    $region49: #{appnp_net_forward.1} parent=5 // pred_check
      _
    $region50: #{appnp_net_forward.1} parent=5 // pred_check_branch
      %291 = sbr.rel (%p288) target = $region52
    $region51: #{appnp_net_forward.1} parent=5 // pred_region
      %s292 = ssub.s32 %s14, 1
      %p293 = scmp.eq.s32.totalorder %s23, 0
      %s294 = scalar_select %p293, %s24, 0
      %s295 = smul.u32 4, %s294
      %p296 = scmp.lt.s32.totalorder %s295, 3
      %s297 = scalar_select %p296, %s295, 3
      %s298 = smul.addr %s297, 4
      %s299 = scalar_lea.vmem %s0, %s298
      %p300 = pneg %p56
      %p301 = pneg %p53
      %p302 = pneg %p77
      %p303 = pneg %p74
      %p304 = pneg %p98
      %p305 = pneg %p95
      %p306 = pneg %p119
      %p307 = pneg %p116
      %p308 = pneg %p140
      %p309 = pneg %p137
      %p310 = pneg %p161
      %p311 = pneg %p158
      %p312 = pneg %p182
      %p313 = pneg %p179
      %p314 = pneg %p203
      %p315 = pneg %p200
      %p316 = pneg %p233
      %p317 = pneg %p230
      %p318 = scmp.eq.s32.totalorder %s23, 10
      %s319 = scalar_select %p318, %s24, 0
      %s320 = smul.u32 4, %s319
      %p321 = scmp.lt.s32.totalorder %s320, 3
      %s322 = scalar_select %p321, %s320, 3
      %s323 = smul.addr %s322, 8
      %s324 = scalar_lea.vmem %s8, %s323
      %p325 = scmp.eq.s32.totalorder %s23, 0
      %s326 = scalar_select %p325, %s24, 0
      %s327 = smul.u32 4, %s326
      %p328 = scmp.lt.s32.totalorder %s327, 3
      %s329 = scalar_select %p328, %s327, 3
      %s330 = smul.addr %s329, 4
      %s331 = scalar_lea.vmem %s0, %s330
      %p332 = scmp.eq.s32.totalorder %s23, 0
      %s333 = scalar_select %p332, %s24, 0
      %s334 = smul.u32 4, %s333
      %p335 = scmp.eq.s32.totalorder %s23, 10
      %s336 = scalar_select %p335, %s24, 0
      %s337 = smul.u32 4, %s336
      %p338 = scmp.lt.s32.totalorder %s337, 3
      %s339 = scalar_select %p338, %s337, 3
      %s340 = smul.addr %s339, 8
      %s341 = scalar_lea.vmem %s8, %s340
      %p342 = scmp.eq.s32.totalorder %s23, 10
      %s343 = scalar_select %p342, %s24, 0
      %s344 = smul.u32 4, %s343
      %s346 = smul.u32 %s24, 32
      %p347 = scmp.eq.s32.totalorder %s23, 0
      // Predicated region
      $region53: #{appnp_net_forward.1} parent=51 // pred_check
        %p348 = pneg %p347
      $region54: #{appnp_net_forward.1} parent=51 // pred_check_branch
        %350 = sbr.rel (%p348) target = $region56
      $region55: #{appnp_net_forward.1} parent=51 // pred_region
        %v351 = vld [vmem:[%s331] sm:$0xf]
        %v352 = vld [vmem:[%s331 + $0x4] sm:$0xf]
        %v353 = vld [vmem:[%s331 + $0x8] sm:$0xf]
        %v354 = vld [vmem:[%s331 + $0xc] sm:$0xf]
        %v355 = vld [vmem:[%s1] sm:$0xf]
        %v356 = vld [vmem:[%s1 + $0x4] sm:$0xf]
        %v357 = vld [vmem:[%s1 + $0x8] sm:$0xf]
        %v358 = vld [vmem:[%s1 + $0xc] sm:$0xf]
        %v359 = vld [vmem:[%s1 + $0x10] sm:$0xf]
        %v360 = vld [vmem:[%s1 + $0x14] sm:$0xf]
        %v361 = vld [vmem:[%s1 + $0x18] sm:$0xf]
        %v362 = vld [vmem:[%s1 + $0x1c] sm:$0xf]
        %v363 = vld [vmem:[%s1 + $0x20] sm:$0xf]
        %v364 = vld [vmem:[%s1 + $0x24] sm:$0xf]
        %v365 = vld [vmem:[%s1 + $0x28] sm:$0xf]
        %v366 = vld [vmem:[%s1 + $0x2c] sm:$0xf]
        %v367 = vld [vmem:[%s1 + $0x30] sm:$0xf]
        %v368 = vld [vmem:[%s1 + $0x34] sm:$0xf]
        %v369 = vld [vmem:[%s1 + $0x38] sm:$0xf]
        %v370 = vld [vmem:[%s1 + $0x3c] sm:$0xf]
        %v371 = vld [vmem:[%s2] sm:$0x1]
        %v373 = vlaneseq
        %v374 = vshrl.u32 %v373, 7
        %v375 = vsub.s32 0, %v374
        %v376 = vrot.slane %v371, %v375
        %v382 = vunpack.c.l.b16 %v351
        %v383 = vunpack.c.l.b16 %v352
        %v384 = vunpack.c.l.b16 %v353
        %v385 = vunpack.c.l.b16 %v354
        %v386 = vpack.c.b16 %v383, %v382
        %v387 = vpack.c.b16 %v385, %v384
        %v406 = vunpack.c.l.b16 %v355
        %v407 = vunpack.c.l.b16 %v356
        %v408 = vunpack.c.l.b16 %v357
        %v409 = vunpack.c.l.b16 %v358
        %v410 = vunpack.c.l.b16 %v359
        %v411 = vunpack.c.l.b16 %v360
        %v412 = vunpack.c.l.b16 %v361
        %v413 = vunpack.c.l.b16 %v362
        %v414 = vunpack.c.l.b16 %v363
        %v415 = vunpack.c.l.b16 %v364
        %v416 = vunpack.c.l.b16 %v365
        %v417 = vunpack.c.l.b16 %v366
        %v418 = vunpack.c.l.b16 %v367
        %v419 = vunpack.c.l.b16 %v368
        %v420 = vunpack.c.l.b16 %v369
        %v421 = vunpack.c.l.b16 %v370
        %v422 = vpack.c.b16 %v407, %v406
        %v423 = vpack.c.b16 %v409, %v408
        %v424 = vpack.c.b16 %v411, %v410
        %v425 = vpack.c.b16 %v413, %v412
        %v426 = vpack.c.b16 %v415, %v414
        %v427 = vpack.c.b16 %v417, %v416
        %v428 = vpack.c.b16 %v419, %v418
        %v429 = vpack.c.b16 %v421, %v420
        %438 = vmatprep.subr.bf16.mxu0 0
        %439 = vmatpush1.bf16.msra.mxu0 %v429
        %440 = vmatprep.subr.bf16.mxu0 0
        %441 = vmatpush1.bf16.msra.mxu0 %v428
        %442 = vmatprep.subr.bf16.mxu0 0
        %443 = vmatpush1.bf16.msra.mxu0 %v427
        %444 = vmatprep.subr.bf16.mxu0 0
        %445 = vmatpush1.bf16.msra.mxu0 %v426
        %446 = vmatprep.subr.bf16.mxu0 0
        %447 = vmatpush1.bf16.msra.mxu0 %v425
        %448 = vmatprep.subr.bf16.mxu0 0
        %449 = vmatpush1.bf16.msra.mxu0 %v424
        %450 = vmatprep.subr.bf16.mxu0 0
        %451 = vmatpush1.bf16.msra.mxu0 %v423
        %452 = vmatprep.subr.bf16.mxu0 0
        %453 = vmatpush1.bf16.msra.mxu0 %v422
        %454 = vmatprep.subr.bf16.mxu0 0
        %455 = vmatpush2.bf16.msra.mxu0 0
        %456 = vmatprep.subr.bf16.mxu0 0
        %457 = vmatpush2.bf16.msra.mxu0 0
        %458 = vmatprep.subr.bf16.mxu0 0
        %459 = vmatpush2.bf16.msra.mxu0 0
        %460 = vmatprep.subr.bf16.mxu0 0
        %461 = vmatpush2.bf16.msra.mxu0 0
        %462 = vmatprep.subr.bf16.mxu0 0
        %463 = vmatpush2.bf16.msra.mxu0 0
        %464 = vmatprep.subr.bf16.mxu0 0
        %465 = vmatpush2.bf16.msra.mxu0 0
        %466 = vmatprep.subr.bf16.mxu0 0
        %467 = vmatpush2.bf16.msra.mxu0 0
        %468 = vmatprep.subr.bf16.mxu0 0
        %469 = vmatpush2.bf16.msra.mxu0 0
        %470 = vmatprep.mubr.bf16.mxu0 0
        %471 = vmatmul.mubr.bf16.gmra.mxu0 %v386
        %v472 = vpop.f32.mrf.mxu0
        %v473 = vadd.f32 %v376, %v472
        %v474 = vpop.f32.mrf.mxu0
        %v475 = vpop.f32.mrf.mxu0
        %v476 = vadd.f32 %v376, %v475
        %v477 = vpop.f32.mrf.mxu0
        %478 = vmatprep.mubr.bf16.mxu0 0
        %479 = vmatmul.mubr.bf16.gmra.mxu0 %v387
        %v480 = vpop.f32.mrf.mxu0
        %v481 = vadd.f32 %v376, %v480
        %v482 = vpop.f32.mrf.mxu0
        %v483 = vpop.f32.mrf.mxu0
        %v484 = vadd.f32 %v376, %v483
        %v485 = vpop.f32.mrf.mxu0
        %486 = vdwg.mxu0
        %v487 = vmax.f32 %v473, 0.0
        %v488 = vmax.f32 %v476, 0.0
        %v489 = vmax.f32 %v481, 0.0
        %v490 = vmax.f32 %v484, 0.0
        %v491 = vpack.c.bf16 %v488, %v487
        %v492 = vpack.c.bf16 %v490, %v489
        %v493 = vld [vmem:[%s3] sm:$0xf]
        %v494 = vld [vmem:[%s3 + $0x4] sm:$0xf]
        %v495 = vld [vmem:[%s3 + $0x8] sm:$0xf]
        %v496 = vld [vmem:[%s3 + $0xc] sm:$0xf]
        %v497 = vld [vmem:[%s3 + $0x10] sm:$0xf]
        %v498 = vld [vmem:[%s3 + $0x14] sm:$0xf]
        %v499 = vld [vmem:[%s3 + $0x18] sm:$0xf]
        %v500 = vld [vmem:[%s3 + $0x1c] sm:$0xf]
        %v501 = vld [vmem:[%s3 + $0x20] sm:$0xf]
        %v502 = vld [vmem:[%s3 + $0x24] sm:$0xf]
        %v503 = vld [vmem:[%s3 + $0x28] sm:$0xf]
        %v504 = vld [vmem:[%s3 + $0x2c] sm:$0xf]
        %v505 = vld [vmem:[%s3 + $0x30] sm:$0xf]
        %v506 = vld [vmem:[%s3 + $0x34] sm:$0xf]
        %v507 = vld [vmem:[%s3 + $0x38] sm:$0xf]
        %v508 = vld [vmem:[%s3 + $0x3c] sm:$0xf]
        %v509 = vld [vmem:[%s4] sm:$0x1]
        %v511 = vlaneseq
        %v512 = vshrl.u32 %v511, 7
        %v513 = vsub.s32 0, %v512
        %v514 = vrot.slane %v509, %v513
        %v532 = vunpack.c.l.b16 %v493
        %v533 = vunpack.c.l.b16 %v494
        %v534 = vunpack.c.l.b16 %v495
        %v535 = vunpack.c.l.b16 %v496
        %v536 = vunpack.c.l.b16 %v497
        %v537 = vunpack.c.l.b16 %v498
        %v538 = vunpack.c.l.b16 %v499
        %v539 = vunpack.c.l.b16 %v500
        %v540 = vunpack.c.l.b16 %v501
        %v541 = vunpack.c.l.b16 %v502
        %v542 = vunpack.c.l.b16 %v503
        %v543 = vunpack.c.l.b16 %v504
        %v544 = vunpack.c.l.b16 %v505
        %v545 = vunpack.c.l.b16 %v506
        %v546 = vunpack.c.l.b16 %v507
        %v547 = vunpack.c.l.b16 %v508
        %v548 = vpack.c.b16 %v533, %v532
        %v549 = vpack.c.b16 %v535, %v534
        %v550 = vpack.c.b16 %v537, %v536
        %v551 = vpack.c.b16 %v539, %v538
        %v552 = vpack.c.b16 %v541, %v540
        %v553 = vpack.c.b16 %v543, %v542
        %v554 = vpack.c.b16 %v545, %v544
        %v555 = vpack.c.b16 %v547, %v546
        %564 = vmatprep.subr.bf16.mxu0 0
        %565 = vmatpush1.bf16.msra.mxu0 %v555
        %566 = vmatprep.subr.bf16.mxu0 0
        %567 = vmatpush1.bf16.msra.mxu0 %v554
        %568 = vmatprep.subr.bf16.mxu0 0
        %569 = vmatpush1.bf16.msra.mxu0 %v553
        %570 = vmatprep.subr.bf16.mxu0 0
        %571 = vmatpush1.bf16.msra.mxu0 %v552
        %572 = vmatprep.subr.bf16.mxu0 0
        %573 = vmatpush1.bf16.msra.mxu0 %v551
        %574 = vmatprep.subr.bf16.mxu0 0
        %575 = vmatpush1.bf16.msra.mxu0 %v550
        %576 = vmatprep.subr.bf16.mxu0 0
        %577 = vmatpush1.bf16.msra.mxu0 %v549
        %578 = vmatprep.subr.bf16.mxu0 0
        %579 = vmatpush1.bf16.msra.mxu0 %v548
        %580 = vmatprep.subr.bf16.mxu0 0
        %581 = vmatpush2.bf16.msra.mxu0 0
        %582 = vmatprep.subr.bf16.mxu0 0
        %583 = vmatpush2.bf16.msra.mxu0 0
        %584 = vmatprep.subr.bf16.mxu0 0
        %585 = vmatpush2.bf16.msra.mxu0 0
        %586 = vmatprep.subr.bf16.mxu0 0
        %587 = vmatpush2.bf16.msra.mxu0 0
        %588 = vmatprep.subr.bf16.mxu0 0
        %589 = vmatpush2.bf16.msra.mxu0 0
        %590 = vmatprep.subr.bf16.mxu0 0
        %591 = vmatpush2.bf16.msra.mxu0 0
        %592 = vmatprep.subr.bf16.mxu0 0
        %593 = vmatpush2.bf16.msra.mxu0 0
        %594 = vmatprep.subr.bf16.mxu0 0
        %595 = vmatpush2.bf16.msra.mxu0 0
        %596 = vmatprep.mubr.bf16.mxu0 0
        %597 = vmatmul.mubr.bf16.gmra.mxu0 %v491
        %v598 = vpop.f32.mrf.mxu0
        %v599 = vadd.f32 %v514, %v598
        %v600 = vpop.f32.mrf.mxu0
        %v601 = vpop.f32.mrf.mxu0
        %v602 = vadd.f32 %v514, %v601
        %v603 = vpop.f32.mrf.mxu0
        %604 = vmatprep.mubr.bf16.mxu0 0
        %605 = vmatmul.mubr.bf16.gmra.mxu0 %v492
        %v606 = vpop.f32.mrf.mxu0
        %v607 = vadd.f32 %v514, %v606
        %v608 = vpop.f32.mrf.mxu0
        %v609 = vpop.f32.mrf.mxu0
        %v610 = vadd.f32 %v514, %v609
        %v611 = vpop.f32.mrf.mxu0
        %612 = vdwg.mxu0
        %v613 = vmax.f32 %v599, 0.0
        %v614 = vmax.f32 %v602, 0.0
        %v615 = vmax.f32 %v607, 0.0
        %v616 = vmax.f32 %v610, 0.0
        %v617 = vpack.c.bf16 %v614, %v613
        %v618 = vpack.c.bf16 %v616, %v615
        %v619 = vld [vmem:[%s5] sm:$0xf]
        %v620 = vld [vmem:[%s5 + $0x4] sm:$0xf]
        %v621 = vld [vmem:[%s5 + $0x8] sm:$0xf]
        %v622 = vld [vmem:[%s5 + $0xc] sm:$0xf]
        %v623 = vld [vmem:[%s5 + $0x10] sm:$0xf]
        %v624 = vld [vmem:[%s5 + $0x14] sm:$0xf]
        %v625 = vld [vmem:[%s5 + $0x18] sm:$0xf]
        %v626 = vld [vmem:[%s5 + $0x1c] sm:$0xf]
        %v627 = vld [vmem:[%s5 + $0x20] sm:$0xf]
        %v628 = vld [vmem:[%s5 + $0x24] sm:$0xf]
        %v629 = vld [vmem:[%s5 + $0x28] sm:$0xf]
        %v630 = vld [vmem:[%s5 + $0x2c] sm:$0xf]
        %v631 = vld [vmem:[%s5 + $0x30] sm:$0xf]
        %v632 = vld [vmem:[%s5 + $0x34] sm:$0xf]
        %v633 = vld [vmem:[%s5 + $0x38] sm:$0xf]
        %v634 = vld [vmem:[%s5 + $0x3c] sm:$0xf]
        %v635 = vld [vmem:[%s6] sm:$0x1]
        %v637 = vlaneseq
        %v638 = vshrl.u32 %v637, 7
        %v639 = vsub.s32 0, %v638
        %v640 = vrot.slane %v635, %v639
        %v658 = vunpack.c.l.b16 %v619
        %v659 = vunpack.c.l.b16 %v620
        %v660 = vunpack.c.l.b16 %v621
        %v661 = vunpack.c.l.b16 %v622
        %v662 = vunpack.c.l.b16 %v623
        %v663 = vunpack.c.l.b16 %v624
        %v664 = vunpack.c.l.b16 %v625
        %v665 = vunpack.c.l.b16 %v626
        %v666 = vunpack.c.l.b16 %v627
        %v667 = vunpack.c.l.b16 %v628
        %v668 = vunpack.c.l.b16 %v629
        %v669 = vunpack.c.l.b16 %v630
        %v670 = vunpack.c.l.b16 %v631
        %v671 = vunpack.c.l.b16 %v632
        %v672 = vunpack.c.l.b16 %v633
        %v673 = vunpack.c.l.b16 %v634
        %v674 = vpack.c.b16 %v659, %v658
        %v675 = vpack.c.b16 %v661, %v660
        %v676 = vpack.c.b16 %v663, %v662
        %v677 = vpack.c.b16 %v665, %v664
        %v678 = vpack.c.b16 %v667, %v666
        %v679 = vpack.c.b16 %v669, %v668
        %v680 = vpack.c.b16 %v671, %v670
        %v681 = vpack.c.b16 %v673, %v672
        %690 = vmatprep.subr.bf16.mxu0 0
        %691 = vmatpush1.bf16.msra.mxu0 %v681
        %692 = vmatprep.subr.bf16.mxu0 0
        %693 = vmatpush1.bf16.msra.mxu0 %v680
        %694 = vmatprep.subr.bf16.mxu0 0
        %695 = vmatpush1.bf16.msra.mxu0 %v679
        %696 = vmatprep.subr.bf16.mxu0 0
        %697 = vmatpush1.bf16.msra.mxu0 %v678
        %698 = vmatprep.subr.bf16.mxu0 0
        %699 = vmatpush1.bf16.msra.mxu0 %v677
        %700 = vmatprep.subr.bf16.mxu0 0
        %701 = vmatpush1.bf16.msra.mxu0 %v676
        %702 = vmatprep.subr.bf16.mxu0 0
        %703 = vmatpush1.bf16.msra.mxu0 %v675
        %704 = vmatprep.subr.bf16.mxu0 0
        %705 = vmatpush1.bf16.msra.mxu0 %v674
        %706 = vmatprep.subr.bf16.mxu0 0
        %707 = vmatpush2.bf16.msra.mxu0 0
        %708 = vmatprep.subr.bf16.mxu0 0
        %709 = vmatpush2.bf16.msra.mxu0 0
        %710 = vmatprep.subr.bf16.mxu0 0
        %711 = vmatpush2.bf16.msra.mxu0 0
        %712 = vmatprep.subr.bf16.mxu0 0
        %713 = vmatpush2.bf16.msra.mxu0 0
        %714 = vmatprep.subr.bf16.mxu0 0
        %715 = vmatpush2.bf16.msra.mxu0 0
        %716 = vmatprep.subr.bf16.mxu0 0
        %717 = vmatpush2.bf16.msra.mxu0 0
        %718 = vmatprep.subr.bf16.mxu0 0
        %719 = vmatpush2.bf16.msra.mxu0 0
        %720 = vmatprep.subr.bf16.mxu0 0
        %721 = vmatpush2.bf16.msra.mxu0 0
        %722 = vmatprep.mubr.bf16.mxu0 0
        %723 = vmatmul.mubr.bf16.gmra.mxu0 %v617
        %v724 = vpop.f32.mrf.mxu0
        %v725 = vadd.f32 %v640, %v724
        %v726 = vpop.f32.mrf.mxu0
        %v727 = vpop.f32.mrf.mxu0
        %v728 = vadd.f32 %v640, %v727
        %v729 = vpop.f32.mrf.mxu0
        %730 = vmatprep.mubr.bf16.mxu0 0
        %731 = vmatmul.mubr.bf16.gmra.mxu0 %v618
        %v732 = vpop.f32.mrf.mxu0
        %v733 = vadd.f32 %v640, %v732
        %v734 = vpop.f32.mrf.mxu0
        %v735 = vpop.f32.mrf.mxu0
        %v736 = vadd.f32 %v640, %v735
        %v737 = vpop.f32.mrf.mxu0
        %738 = vdwg.mxu0
        %s739 = scalar_lea.vmem [#allocation2], %s346
        %740 = vst [vmem:[%s739] sm:$0xff] %v725
        %741 = vst [vmem:[%s739 + $0x8] sm:$0xff] %v728
        %742 = vst [vmem:[%s739 + $0x10] sm:$0xff] %v733
        %743 = vst [vmem:[%s739 + $0x18] sm:$0xff] %v736
        %v744 = vpack.c.bf16 %v728, %v725
        %v745 = vpack.c.bf16 %v736, %v733
        %v748 = vunpack.c.l.b16 %v744
        %v749 = vunpack.c.h.b16 %v744
        %v750 = vunpack.c.l.b16 %v745
        %v751 = vunpack.c.h.b16 %v745
        %v752 = vpack.c.b16 %v748, %v748
        %v753 = vpack.c.b16 %v749, %v749
        %v754 = vpack.c.b16 %v750, %v750
        %v755 = vpack.c.b16 %v751, %v751
        %s760 = sshra.s32 %s346, 3
        %s761 = sand.u32 %s346, 7
        %s762 = smul.addr %s760, 4
        %s763 = scalar_lea.vmem [#allocation3], %s762
        %764 = vst [vmem:[%s763] sm:$0xf] %v752
        %765 = vst [vmem:[%s763 + $0x4] sm:$0xf] %v753
        %766 = vst [vmem:[%s763 + $0x8] sm:$0xf] %v754
        %767 = vst [vmem:[%s763 + $0xc] sm:$0xf] %v755
      $region56: #{appnp_net_forward.1} parent=51 // pred_fallthru
        _
      %p768 = scmp.gt.s32.totalorder %s23, 0
      // Predicated region
      $region57: #{appnp_net_forward.1} parent=51 // pred_check
        %p769 = pneg %p768
      $region58: #{appnp_net_forward.1} parent=51 // pred_check_branch
        %771 = sbr.rel (%p769) target = $region60
      $region59: #{appnp_net_forward.1} parent=51 // pred_region
        %s772 = sshra.s32 %s346, 3
        %s773 = sand.u32 %s346, 7
        %s774 = smul.addr %s772, 4
        %s775 = scalar_lea.vmem %s7, %s774
        %v776 = vld [vmem:[%s775] sm:$0xf]
        %v777 = vld [vmem:[%s775 + $0x4] sm:$0xf]
        %v778 = vld [vmem:[%s775 + $0x8] sm:$0xf]
        %v779 = vld [vmem:[%s775 + $0xc] sm:$0xf]
        %s780 = sadd.s32 %s23, 1
        %s781 = sand.u32 %s780, 1
        %s782 = smul.u32 %s781, 4
        %s783 = smul.addr %s782, 4
        %s784 = scalar_lea.vmem [#allocation3], %s783
        %v785 = vld [vmem:[%s784] sm:$0xf]
        %v786 = vld [vmem:[%s784 + $0x4] sm:$0xf]
        %v787 = vld [vmem:[%s784 + $0x8] sm:$0xf]
        %v788 = vld [vmem:[%s784 + $0xc] sm:$0xf]
        %v793 = vunpack.c.l.b16 %v776
        %v794 = vunpack.c.l.b16 %v777
        %v795 = vunpack.c.l.b16 %v778
        %v796 = vunpack.c.l.b16 %v779
        %v797 = vpack.c.b16 %v794, %v793
        %v798 = vpack.c.b16 %v796, %v795
        %v803 = vunpack.c.l.b16 %v785
        %v804 = vunpack.c.l.b16 %v786
        %v805 = vunpack.c.l.b16 %v787
        %v806 = vunpack.c.l.b16 %v788
        %v807 = vpack.c.b16 %v804, %v803
        %v808 = vpack.c.b16 %v806, %v805
        %vm811 = vcmask 261120
        %v813 = vsel %vm811, %v797, 0
        %v816 = vsel %vm811, %v798, 0
        %818 = vmatprep.subr.bf16.mxu0 0
        %819 = vmatpush1.bf16.msra.mxu0 0
        %820 = vmatprep.subr.bf16.mxu0 0
        %821 = vmatpush1.bf16.msra.mxu0 0
        %822 = vmatprep.subr.bf16.mxu0 0
        %823 = vmatpush1.bf16.msra.mxu0 0
        %824 = vmatprep.subr.bf16.mxu0 0
        %825 = vmatpush1.bf16.msra.mxu0 0
        %826 = vmatprep.subr.bf16.mxu0 0
        %827 = vmatpush1.bf16.msra.mxu0 0
        %828 = vmatprep.subr.bf16.mxu0 0
        %829 = vmatpush1.bf16.msra.mxu0 0
        %830 = vmatprep.subr.bf16.mxu0 0
        %831 = vmatpush1.bf16.msra.mxu0 %v808
        %832 = vmatprep.subr.bf16.mxu0 0
        %833 = vmatpush1.bf16.msra.mxu0 %v807
        %834 = vmatprep.subr.bf16.mxu0 0
        %835 = vmatpush2.bf16.msra.mxu0 0
        %836 = vmatprep.subr.bf16.mxu0 0
        %837 = vmatpush2.bf16.msra.mxu0 0
        %838 = vmatprep.subr.bf16.mxu0 0
        %839 = vmatpush2.bf16.msra.mxu0 0
        %840 = vmatprep.subr.bf16.mxu0 0
        %841 = vmatpush2.bf16.msra.mxu0 0
        %842 = vmatprep.subr.bf16.mxu0 0
        %843 = vmatpush2.bf16.msra.mxu0 0
        %844 = vmatprep.subr.bf16.mxu0 0
        %845 = vmatpush2.bf16.msra.mxu0 0
        %846 = vmatprep.subr.bf16.mxu0 0
        %847 = vmatpush2.bf16.msra.mxu0 0
        %848 = vmatprep.subr.bf16.mxu0 0
        %849 = vmatpush2.bf16.msra.mxu0 0
        %850 = vmatprep.mubr.bf16.mxu0 0
        %851 = vmatmul.mubr.bf16.gmra.mxu0 %v813
        %v852 = vpop.f32.mrf.mxu0
        %v853 = vadd.f32 0.0, %v852
        %v854 = vpop.f32.mrf.mxu0
        %v855 = vpop.f32.mrf.mxu0
        %v856 = vadd.f32 0.0, %v855
        %v857 = vpop.f32.mrf.mxu0
        %858 = vmatprep.mubr.bf16.mxu0 0
        %859 = vmatmul.mubr.bf16.gmra.mxu0 %v816
        %v860 = vpop.f32.mrf.mxu0
        %v861 = vadd.f32 0.0, %v860
        %v862 = vpop.f32.mrf.mxu0
        %v863 = vpop.f32.mrf.mxu0
        %v864 = vadd.f32 0.0, %v863
        %v865 = vpop.f32.mrf.mxu0
        %866 = vdwg.mxu0
        %v867 = vmul.f32 %v853, 0.9
        %v868 = vmul.f32 %v856, 0.9
        %v869 = vmul.f32 %v861, 0.9
        %v870 = vmul.f32 %v864, 0.9
        %s871 = scalar_lea.vmem [#allocation2], %s346
        %v872 = vld [vmem:[%s871] sm:$0xff]
        %v873 = vld [vmem:[%s871 + $0x8] sm:$0xff]
        %v874 = vld [vmem:[%s871 + $0x10] sm:$0xff]
        %v875 = vld [vmem:[%s871 + $0x18] sm:$0xff]
        %v876 = vmul.f32 %v872, 0.1
        %v877 = vmul.f32 %v873, 0.1
        %v878 = vmul.f32 %v874, 0.1
        %v879 = vmul.f32 %v875, 0.1
        %v880 = vadd.f32 %v867, %v876
        %v881 = vadd.f32 %v868, %v877
        %v882 = vadd.f32 %v869, %v878
        %v883 = vadd.f32 %v870, %v879
        %p884 = scmp.lt.s32.totalorder %s23, 10
        // Predicated region
        $region61: #{appnp_net_forward.1} parent=59 // pred_check
          %p885 = pneg %p884
        $region62: #{appnp_net_forward.1} parent=59 // pred_check_branch
          %887 = sbr.rel (%p885) target = $region64
        $region63: #{appnp_net_forward.1} parent=59 // pred_region
          %v888 = vpack.c.bf16 %v881, %v880
          %v889 = vpack.c.bf16 %v883, %v882
          %p890 = scmp.eq.s32.totalorder %s781, 1
          // Predicated region
          $region65: #{appnp_net_forward.1} parent=63 // pred_check
            %p891 = pneg %p890
          $region66: #{appnp_net_forward.1} parent=63 // pred_check_branch
            %893 = sbr.rel (%p891) target = $region68
          $region67: #{appnp_net_forward.1} parent=63 // pred_region
            %v896 = vunpack.c.l.b16 %v888
            %v897 = vunpack.c.h.b16 %v888
            %v898 = vunpack.c.l.b16 %v889
            %v899 = vunpack.c.h.b16 %v889
            %v900 = vpack.c.b16 %v896, %v896
            %v901 = vpack.c.b16 %v897, %v897
            %v902 = vpack.c.b16 %v898, %v898
            %v903 = vpack.c.b16 %v899, %v899
            %s908 = smul.addr %s772, 4
            %s909 = scalar_lea.vmem [#allocation3], %s908
            %910 = vst [vmem:[%s909] sm:$0xf] %v900
            %911 = vst [vmem:[%s909 + $0x4] sm:$0xf] %v901
            %912 = vst [vmem:[%s909 + $0x8] sm:$0xf] %v902
            %913 = vst [vmem:[%s909 + $0xc] sm:$0xf] %v903
          $region68: #{appnp_net_forward.1} parent=63 // pred_fallthru
            _
          %p914 = scmp.eq.s32.totalorder %s781, 0
          // Predicated region
          $region69: #{appnp_net_forward.1} parent=63 // pred_check
            %p915 = pneg %p914
          $region70: #{appnp_net_forward.1} parent=63 // pred_check_branch
            %917 = sbr.rel (%p915) target = $region72
          $region71: #{appnp_net_forward.1} parent=63 // pred_region
            %v920 = vunpack.c.l.b16 %v888
            %v921 = vunpack.c.h.b16 %v888
            %v922 = vunpack.c.l.b16 %v889
            %v923 = vunpack.c.h.b16 %v889
            %v924 = vpack.c.b16 %v920, %v920
            %v925 = vpack.c.b16 %v921, %v921
            %v926 = vpack.c.b16 %v922, %v922
            %v927 = vpack.c.b16 %v923, %v923
            %s932 = sadd.s32 %s772, 4
            %s933 = smul.addr %s932, 4
            %s934 = scalar_lea.vmem [#allocation3], %s933
            %935 = vst [vmem:[%s934] sm:$0xf] %v924
            %936 = vst [vmem:[%s934 + $0x4] sm:$0xf] %v925
            %937 = vst [vmem:[%s934 + $0x8] sm:$0xf] %v926
            %938 = vst [vmem:[%s934 + $0xc] sm:$0xf] %v927
          $region72: #{appnp_net_forward.1} parent=63 // pred_fallthru
            _
        $region64: #{appnp_net_forward.1} parent=59 // pred_fallthru
          _
        %p939 = scmp.eq.s32.totalorder %s23, 10
        // Predicated region
        $region73: #{appnp_net_forward.1} parent=59 // pred_check
          %p940 = pneg %p939
        $region74: #{appnp_net_forward.1} parent=59 // pred_check_branch
          %942 = sbr.rel (%p940) target = $region76
        $region75: #{appnp_net_forward.1} parent=59 // pred_region
          %943 = vst [vmem:[%s341] sm:$0xff] %v880
          %944 = vst [vmem:[%s341 + $0x8] sm:$0xff] %v881
          %945 = vst [vmem:[%s341 + $0x10] sm:$0xff] %v882
          %946 = vst [vmem:[%s341 + $0x18] sm:$0xff] %v883
        $region76: #{appnp_net_forward.1} parent=59 // pred_fallthru
          _
      $region60: #{appnp_net_forward.1} parent=51 // pred_fallthru
        _
      %p947 = scmp.eq.s32.totalorder %s23, 10
      %s948 = scalar_select %p947, %s24, 0
      %s949 = smul.u32 4, %s948
      %p950 = scmp.lt.s32.totalorder %s949, 3
      %s951 = scalar_select %p950, %s949, 3
      %s952 = smul.addr %s951, 8
      %s953 = scalar_lea.vmem %s8, %s952
      // Predicated region
      $region77: #{appnp_net_forward.1} parent=51 // pred_check
        %p954 = pneg %p230
      $region78: #{appnp_net_forward.1} parent=51 // pred_check_branch
        %956 = sbr.rel (%p954) target = $region80
      $region79: #{appnp_net_forward.1} parent=51 // pred_region
        %p957 = scmp.eq.s32.totalorder %s23, 10
        %s958 = scalar_select %p957, %s24, 0
        %s959 = smul.u32 4, %s958
      $region80: #{appnp_net_forward.1} parent=51 // pred_fallthru
        _
    $region52: #{appnp_net_forward.1} parent=5 // pred_fallthru
      _
    %p960 = scmp.le.s32.totalorder 2, %s14
    // Predicated region
    $region81: #{appnp_net_forward.1} parent=5 // pred_check
      %p961 = pneg %p960
    $region82: #{appnp_net_forward.1} parent=5 // pred_check_branch
      %963 = sbr.rel (%p961) target = $region84
    $region83: #{appnp_net_forward.1} parent=5 // pred_region
      %s964 = ssub.s32 %s14, 2
      // Predicated region
      $region85: #{appnp_net_forward.1} parent=83 // pred_check
        %p965 = pneg %p236
      $region86: #{appnp_net_forward.1} parent=83 // pred_check_branch
        %967 = sbr.rel (%p965) target = $region88
      $region87: #{appnp_net_forward.1} parent=83 // pred_region
        %p968 = scmp.eq.s32.totalorder %s25, 10
        %s969 = scalar_select %p968, %s26, 0
        %s970 = smul.u32 4, %s969
        %p971 = scmp.lt.s32.totalorder %s970, 3
        %s972 = scalar_select %p971, %s970, 3
        %s973 = smul.addr %s972, 8
        %s974 = scalar_lea.vmem %s8, %s973
      $region88: #{appnp_net_forward.1} parent=83 // pred_fallthru
        _
    $region84: #{appnp_net_forward.1} parent=5 // pred_fallthru
      _
  $region6: #{appnp_net_forward.1} parent=0 // loop_footer
    %s18 = sadd.s32 1, %s14
  $region7: #{appnp_net_forward.1} parent=0 // loop_footer_branch
    %13 = sbr.rel target = $region3
  $region8: #{appnp_net_forward.1} parent=0 // loop_exit
    _

</llo_original>
